<compile_context>
chip_gen: v5e
topology: v5e:2x2
jax: 0.10.0
libtpu: 0.0.40
codegen_flags: <defaults>
</compile_context>

<pallas_src>
import functools

import numpy as np
import jax
import jax.numpy as jnp
from jax.experimental import pallas as pl
from jax.experimental.pallas import tpu as pltpu

_LANE = 128
_SUBLANE = 8


def _round_up(x, m):
    return (x + m - 1) // m * m


def _vmem_limit_bytes():
    """~80% of physical VMEM (64 MiB on v7x, 128 MiB on v5e/v6e); safe fallback."""
    try:
        cap = int(pltpu.get_tpu_info().vmem_capacity_bytes)
    except Exception:
        cap = 64 << 20
    return int(cap * 0.8), cap


def _choose_tile_n(hid, b_pad, max_seg_cols, vmem_limit, target_tile_bytes):
    """Pick a lane-dense output tile so the per-tile w_last DMA is ~target bytes,
    never larger than the widest (128-padded) layer segment, and so double-buffered
    tiles stay well inside the VMEM budget."""
    tn = _round_up(max(_LANE, target_tile_bytes // (2 * hid)), _LANE)
    tn = min(tn, _round_up(max_seg_cols, _LANE))

    def per_step_vmem(t):
        # double-buffered: w tile (bf16) + bias tile (f32) + output tile (f32)
        return 2 * (hid * t * 2 + t * 4 + b_pad * t * 4)

    while tn > _LANE and per_step_vmem(tn) > vmem_limit // 2:
        tn -= _LANE
    return max(tn, _LANE)


# ----------------------------------------------------------------------------
# Pallas kernel: fused last-layer weight stream for all five hypernetworks.
# ----------------------------------------------------------------------------
def _fused_last_layer_kernel(tile_layer_ref, h_ref, w_ref, b_ref, out_ref):
    # tile_layer_ref (SMEM scalar-prefetch) is only used by the index_maps.
    del tile_layer_ref
    h = h_ref[0].astype(jnp.bfloat16)                      # (B_pad, hid)
    out_ref[...] = jnp.dot(h, w_ref[...],                  # bf16 stream, f32 acc
                           preferred_element_type=jnp.float32) + b_ref[...]


# ----------------------------------------------------------------------------
# Parameter construction (glue) mirroring FCBlock / last_hyper_layer_init
# ----------------------------------------------------------------------------
def init_fcblock_params(key, in_features, out_features, hidden_ch,
                        num_hidden_layers, scale_last=0.1):
    """kaiming_normal_(fan_in, relu) weights (last layer *0.1), default uniform
    biases.  Weights returned pre-transposed (in, out), float32."""
    dims_in = [in_features] + [hidden_ch] * (num_hidden_layers + 1)
    dims_out = [hidden_ch] * (num_hidden_layers + 1) + [out_features]
    ws_f32, bs = [], []
    for l, (fi, fo) in enumerate(zip(dims_in, dims_out)):
        key, kw, kb = jax.random.split(key, 3)
        std = (2.0 / fi) ** 0.5
        w = jax.random.normal(kw, (fo, fi), dtype=jnp.float32) * std       # (out, in)
        if l == len(dims_in) - 1:
            w = w * scale_last                                             # last_hyper_layer_init
        bound = 1.0 / (fi ** 0.5)
        b = jax.random.uniform(kb, (1, fo), dtype=jnp.float32,
                               minval=-bound, maxval=bound)
        ws_f32.append(jnp.transpose(w))                                    # (in, out)
        bs.append(b)
    return key, ws_f32, bs


def hyper_fc_layer_specs(in_ch_pos, in_ch_view, out_ch, hidden_ch):
    # (predicted in_ch, predicted out_ch, has LayerNorm+ReLU wrapper)
    # in_ch_pos is unused, exactly as in the PyTorch HyperFC.
    return [
        (hidden_ch, hidden_ch, False),               # HyperLinear
        (hidden_ch + in_ch_view, hidden_ch, True),   # HyperLayer
        (hidden_ch, hidden_ch, True),                # HyperLayer
        (hidden_ch, hidden_ch // 2, True),           # HyperLayer
        (hidden_ch // 2, out_ch, False),             # HyperLinear
    ]


def init_hyper_fc_params(key, layer_specs, hyper_in_ch,
                         hyper_num_hidden_layers, hyper_hidden_ch):
    params = []
    for (in_ch, out_ch, has_norm) in layer_specs:
        key, ws_f32, bs = init_fcblock_params(
            key, hyper_in_ch, in_ch * out_ch + out_ch,
            hyper_hidden_ch, hyper_num_hidden_layers)
        params.append(dict(in_ch=in_ch, out_ch=out_ch, norm_relu=has_norm,
                           weights_f32=ws_f32, biases=bs,
                           w_last_bf16=ws_f32[-1].astype(jnp.bfloat16)))
    return params


# ----------------------------------------------------------------------------
# Fused HyperFC forward
# ----------------------------------------------------------------------------
def hyper_fc_forward(hyper_input, params, *, target_tile_bytes=None):
    """Equivalent of HyperFC.forward: for each of the 5 layers returns the predicted
    BatchLinear parameters (weights (B,out,in), biases (B,1,out)) plus a flag for the
    parameter-free LayerNorm+ReLU wrapper of HyperLayer."""
    B, _ = hyper_input.shape
    L = len(params)
    hid = params[0]['weights_f32'][-1].shape[0]                 # hyper_hidden_ch
    assert all(p['weights_f32'][-1].shape[0] == hid for p in params)
    B_pad = max(_SUBLANE, _round_up(B, _SUBLANE))

    vmem_limit, vmem_cap = _vmem_limit_bytes()
    if target_tile_bytes is None:
        # v7x (64 MiB VMEM, 3.2 TB/s HBM) wants bigger tiles to hide step overhead.
        target_tile_bytes = (4 << 20) if vmem_cap <= (64 << 20) else (2 << 20)

    seg_cols = [p['in_ch'] * p['out_ch'] + p['out_ch'] for p in params]
    tn = _choose_tile_n(hid, B_pad, max(seg_cols), vmem_limit, target_tile_bytes)

    # Each layer's output segment is padded to a multiple of tn so every tile
    # belongs to exactly one layer (single writer per output block -> "parallel" safe).
    seg_pad = [_round_up(c, tn) for c in seg_cols]
    offsets = [0]
    for sp in seg_pad[:-1]:
        offsets.append(offsets[-1] + sp)
    total_pad = int(sum(seg_pad))
    n_tiles = total_pad // tn
    tile_to_layer = jnp.asarray(np.concatenate(
        [np.full(sp // tn, l, dtype=np.int32) for l, sp in enumerate(seg_pad)]))

    # Concatenate the five streamed last-layer weights/biases along the output dim.
    w_cat = jnp.concatenate(
        [jnp.pad(p['w_last_bf16'], ((0, 0), (0, sp - c)))
         for p, c, sp in zip(params, seg_cols, seg_pad)], axis=1)      # (hid, total_pad) bf16
    b_cat = jnp.concatenate(
        [jnp.pad(p['biases'][-1], ((0, 0), (0, sp - c)))
         for p, c, sp in zip(params, seg_cols, seg_pad)], axis=1)      # (1, total_pad) f32

    hidden_tree = tuple((tuple(p['weights_f32'][:-1]), tuple(p['biases'][:-1]))
                        for p in params)
    layer_meta = [(p['in_ch'], p['out_ch']) for p in params]

    grid_spec = pltpu.PrefetchScalarGridSpec(
        num_scalar_prefetch=1,
        grid=(n_tiles,),
        in_specs=[
            # Hidden activations: one (B_pad, hid) slab per layer, selected per tile.
            pl.BlockSpec((1, B_pad, hid), lambda j, tl: (tl[j], 0, 0)),
            # Streamed last-layer weight / bias tiles (lane-dense, 128-aligned).
            pl.BlockSpec((hid, tn), lambda j, tl: (0, j)),
            pl.BlockSpec((1, tn), lambda j, tl: (0, j)),
        ],
        out_specs=pl.BlockSpec((B_pad, tn), lambda j, tl: (0, j)),
    )
    cost = pl.CostEstimate(
        flops=int(2 * B_pad * hid * total_pad),
        transcendentals=0,
        bytes_accessed=int(L * B_pad * hid * 4 + hid * total_pad * 2
                           + total_pad * 4 + B_pad * total_pad * 4))

    call = pl.pallas_call(
        _fused_last_layer_kernel,
        out_shape=jax.ShapeDtypeStruct((B_pad, total_pad), jnp.float32),
        grid_spec=grid_spec,
        compiler_params=pltpu.CompilerParams(
            dimension_semantics=("parallel",),      # megacore sharding of the stream
            vmem_limit_bytes=vmem_limit,
        ),
        cost_estimate=cost,
    )

    @jax.jit
    def _run(x, hidden_tree, w_cat, b_cat, tile_to_layer):
        x_pad = jnp.pad(x, ((0, B_pad - B), (0, 0))) if B_pad != B else x
        # Hidden FCBlock layers (tiny) computed once, exactly in f32.
        hs = []
        for ws, bs in hidden_tree:
            h = x_pad
            for w, b in zip(ws, bs):
                h = jnp.maximum(
                    jnp.dot(h, w, precision=jax.lax.Precision.HIGHEST) + b, 0.0)
            hs.append(h)
        h_stack = jnp.stack(hs, axis=0)                       # (L, B_pad, hid) f32
        out = call(tile_to_layer, h_stack, w_cat, b_cat)      # (B_pad, total_pad) f32
        # Slice + reshape fused inside the same jit (no materialized padded copy).
        results = []
        for (in_c, out_c), off in zip(layer_meta, offsets):
            seg = out[:B, off:off + in_c * out_c + out_c]
            w = seg[:, :in_c * out_c].reshape(B, out_c, in_c)
            b = seg[:, in_c * out_c:].reshape(B, 1, out_c)
            results.append((w, b))
        return tuple(results)

    results = _run(hyper_input, hidden_tree, w_cat, b_cat, tile_to_layer)
    # TODO(synk): the LayerNorm+ReLU (norm_nl) of HyperLayer belongs to the *predicted*
    # net and is only executed when that net is applied to its own inputs, not in
    # HyperFC.forward; it is returned here as a flag on the predicted layer.
    return [dict(weights=w, biases=b, norm_relu=p['norm_relu'])
            for (w, b), p in zip(results, params)]


# ----------------------------------------------------------------------------
# Pure-JAX references
# ----------------------------------------------------------------------------
def _hidden_f32(x, ws, bs):
    h = x
    for w, b in zip(ws, bs):
        h = jnp.maximum(jnp.dot(h, w, precision=jax.lax.Precision.HIGHEST) + b, 0.0)
    return h


def _reference_layer_bf16(x, p):
    """Matches kernel semantics: f32 hidden layers, bf16 last-layer stream, f32 acc."""
    h = _hidden_f32(x, p['weights_f32'][:-1], p['biases'][:-1])
    return jnp.dot(h.astype(jnp.bfloat16), p['w_last_bf16'],
                   preferred_element_type=jnp.float32) + p['biases'][-1]


def _reference_layer_f32(x, p):
    """Exact f32 semantics of the PyTorch FCBlock."""
    h = _hidden_f32(x, p['weights_f32'][:-1], p['biases'][:-1])
    return jnp.dot(h, p['weights_f32'][-1],
                   precision=jax.lax.Precision.HIGHEST) + p['biases'][-1]


if __name__ == "__main__":
    # Small, deterministic configuration.
    B = 2
    in_ch_pos = 3            # unused by HyperFC (matches the PyTorch module)
    in_ch_view = 3
    out_ch = 4
    hyper_in_ch = 8
    hyper_num_hidden_layers = 1
    hyper_hidden_ch = 32
    hidden_ch = 16

    key = jax.random.PRNGKey(0)
    key, k_in = jax.random.split(key)
    hyper_input = jax.random.normal(k_in, (B, hyper_in_ch), dtype=jnp.float32)

    layer_specs = hyper_fc_layer_specs(in_ch_pos, in_ch_view, out_ch, hidden_ch)
    params = init_hyper_fc_params(key, layer_specs, hyper_in_ch,
                                  hyper_num_hidden_layers, hyper_hidden_ch)

    predicted = hyper_fc_forward(hyper_input, params)
    jax.block_until_ready([(d['weights'], d['biases']) for d in predicted])

    for p, layer in zip(params, predicted):
        in_c, out_c = p['in_ch'], p['out_ch']
        assert layer['weights'].shape == (B, out_c, in_c)
        assert layer['biases'].shape == (B, 1, out_c)

        # Tight check vs a reference with identical bf16-stream semantics.
        ref16 = _reference_layer_bf16(hyper_input, p)
        rw16 = ref16[..., :in_c * out_c].reshape(B, out_c, in_c)
        rb16 = ref16[..., in_c * out_c:in_c * out_c + out_c].reshape(B, 1, out_c)
        assert jnp.allclose(layer['weights'], rw16, atol=1e-4, rtol=1e-4)
        assert jnp.allclose(layer['biases'], rb16, atol=1e-4, rtol=1e-4)

        # Loose check vs the exact f32 PyTorch semantics (bf16 weight stream only).
        ref32 = _reference_layer_f32(hyper_input, p)
        rw32 = ref32[..., :in_c * out_c].reshape(B, out_c, in_c)
        rb32 = ref32[..., in_c * out_c:in_c * out_c + out_c].reshape(B, 1, out_c)
        assert jnp.allclose(layer['weights'], rw32, atol=3e-2, rtol=5e-2)
        assert jnp.allclose(layer['biases'], rb32, atol=3e-2, rtol=5e-2)

    print("KERNEL_OK")
</pallas_src>

<mosaic_0001>
module attributes {stable_mosaic.version = 11 : i64} {
  func.func @_fused_last_layer_kernel(%arg0: i32, %arg1: memref<5xi32, #tpu.memory_space<smem>>, %arg2: memref<1x8x32xf32, #tpu.memory_space<vmem>>, %arg3: memref<32x384xbf16, #tpu.memory_space<vmem>>, %arg4: memref<1x384xf32, #tpu.memory_space<vmem>>, %arg5: memref<8x384xf32, #tpu.memory_space<vmem>>) attributes {dimension_semantics = [#tpu.dimension_semantics<parallel>], iteration_bounds = array<i64: 5>, scalar_prefetch = 1 : i64, scratch_operands = 0 : i64, tpu.core_type = #tpu.core_type<tc>, window_params = [{transform_indices = @transform_0, window_bounds = array<i64: 1, 8, 32>}, {transform_indices = @transform_1, window_bounds = array<i64: 32, 384>}, {transform_indices = @transform_2, window_bounds = array<i64: 1, 384>}, {transform_indices = @transform_3, window_bounds = array<i64: 8, 384>}]} {
    %c0 = arith.constant 0 : index
    %c0_0 = arith.constant 0 : index
    %c0_1 = arith.constant 0 : index
    %0 = vector.load %arg2[%c0, %c0_0, %c0_1] : memref<1x8x32xf32, #tpu.memory_space<vmem>>, vector<1x8x32xf32>
    %1 = vector.shape_cast %0 : vector<1x8x32xf32> to vector<8x32xf32>
    %2 = arith.truncf %1 : vector<8x32xf32> to vector<8x32xbf16>
    %c0_2 = arith.constant 0 : index
    %c0_3 = arith.constant 0 : index
    %3 = vector.load %arg3[%c0_2, %c0_3] : memref<32x384xbf16, #tpu.memory_space<vmem>>, vector<32x384xbf16>
    %cst = arith.constant dense<0.000000e+00> : vector<8x384xf32>
    %4 = tpu.matmul %2, %3, %cst {dimension_numbers = #tpu.dot_dimension_numbers<[1], [0], [0], [1], [0, 0, 1, 1], [], []>} : vector<8x32xbf16>, vector<32x384xbf16>, vector<8x384xf32> -> vector<8x384xf32>
    %c0_4 = arith.constant 0 : index
    %c0_5 = arith.constant 0 : index
    %5 = vector.load %arg4[%c0_4, %c0_5] : memref<1x384xf32, #tpu.memory_space<vmem>>, vector<1x384xf32>
    %6 = vector.broadcast %5 : vector<1x384xf32> to vector<8x384xf32>
    %7 = arith.addf %4, %6 : vector<8x384xf32>
    %c0_6 = arith.constant 0 : index
    %c0_7 = arith.constant 0 : index
    %8 = vector.load %arg5[%c0_6, %c0_7] : memref<8x384xf32, #tpu.memory_space<vmem>>, vector<8x384xf32>
    tpu.vector_store %arg5[%c0_6, %c0_7], %7 {strides = array<i32>} : memref<8x384xf32, #tpu.memory_space<vmem>>, vector<8x384xf32>,
    return
  }
  func.func @transform_0(%arg0: i32, %arg1: memref<5xi32, #tpu.memory_space<smem>>) -> (i32, i32, i32) {
    %0 = arith.index_cast %arg0 : i32 to index
    %1 = memref.load %arg1[%0] : memref<5xi32, #tpu.memory_space<smem>>
    %c0_i32 = arith.constant 0 : i32
    %c0_i32_0 = arith.constant 0 : i32
    %c0_i32_1 = arith.constant 0 : i32
    return %1, %c0_i32, %c0_i32_0 : i32, i32, i32
  }
  func.func @transform_1(%arg0: i32, %arg1: memref<5xi32, #tpu.memory_space<smem>>) -> (i32, i32) {
    %c0_i32 = arith.constant 0 : i32
    %c0_i32_0 = arith.constant 0 : i32
    return %c0_i32, %arg0 : i32, i32
  }
  func.func @transform_2(%arg0: i32, %arg1: memref<5xi32, #tpu.memory_space<smem>>) -> (i32, i32) {
    %c0_i32 = arith.constant 0 : i32
    %c0_i32_0 = arith.constant 0 : i32
    return %c0_i32, %arg0 : i32, i32
  }
  func.func @transform_3(%arg0: i32, %arg1: memref<5xi32, #tpu.memory_space<smem>>) -> (i32, i32) {
    %c0_i32 = arith.constant 0 : i32
    %c0_i32_0 = arith.constant 0 : i32
    return %c0_i32, %arg0 : i32, i32
  }
}

</mosaic_0001>

<llo_original>
// kernel: _run.1
$region0: #{_run.1}
  #allocation0 [shape = 'u32[]', space=smem, size = 0x4, offset = 0x4, fixed_abs, tag = 'smem constant byte address 0x4 - core index']
  #allocation1 [shape = 'u32[72,128]{1,0:T(1,128)}', space=vmem, size = 0x9000, scoped, tag = 'internal scratch']
  #allocation2 [shape = 's32[1]{0}', space=sflag, size = 0x4, scoped, tag = 'scoped memory for _run.1']
  #allocation3 [shape = 'u8[512]{0}', space=smem, size = 0x200, scoped, tag = 'prefetched SMEM operand 0']
  %s0 = inlined_call_operand.vmem [shape: s32[5], index: 0, kind: input, shape index: {}]
  %s1 = inlined_call_operand.vmem [shape: f32[5,8,32], index: 1, kind: input, shape index: {}]
  %s2 = inlined_call_operand.vmem [shape: bf16[32,1920], index: 2, kind: input, shape index: {}]
  %s3 = inlined_call_operand.vmem [shape: f32[1,1920], index: 3, kind: input, shape index: {}]
  %s4 = inlined_call_operand.vmem [shape: f32[8,1920], index: 4, kind: output, shape index: {}]
  %s5 = sld [smem:[#allocation0]]
  $region71: #{_run.1} parent=0
    _
  %s7 = ssub.s32 1, %s5
  %s8 = scalar_select 0, %s7, %s5
  %s10 = sshll.u32 %s0, 4
  %s11 = int_to_ptr.vmem [resolvable:$true] %s10
  %13 = dma.vmem_to_smem %s11, 16, [#allocation3], [#allocation2]
  %15 = dma.done [#allocation2], 16
  %16 = sfence
  $region1: #{_run.1} parent=0
    #allocation4 [shape = 'u8[49152]{0}', space=vmem, size = 0xc000, scoped, tag = 'input window, operand 2']
    loop: start=0, step=1, limit=7
    $region2: #{_run.1} parent=1 // loop_pre_header
      _
    $region3: #{_run.1} parent=1 // loop_header
      %s18 = sphi 0, %s22
      %p19 = scmp.ge.s32.totalorder %s18, 7
      %s30 = sphi 0, %s32
      %s33 = sphi 0, %s30
      %s34 = sphi 0, %s33
      %s50 = sphi 0, %s34
      %s56 = sphi 0, %s58
      %s59 = sphi 0, %s56
      %s60 = sphi 0, %s59
      %s76 = sphi 0, %s60
      %s82 = sphi 0, %s84
      %s85 = sphi 0, %s82
      %s86 = sphi 0, %s85
      %s102 = sphi 0, %s86
      %s108 = sphi 0, %s110
      %s111 = sphi 0, %s108
      %s112 = sphi 0, %s111
      %s128 = sphi 0, %s112
    $region4: #{_run.1} parent=1 // loop_header_branch
      %21 = sbr.rel (%p19) target = $region8
    $region5: #{_run.1} parent=1 // loop_body
      %s23 = ssub.s32 %s18, 1
      %s24 = ssub.s32 %s18, 2
      %s25 = sadd.s32 %s18, 1
      %s26 = sld [smem:[#allocation3 + %s18]]
      %s27 = sld [smem:[#allocation3 + %s25]]
      %s28 = ssub.s32 %s26, %s27
      %p29 = scmp.eq.s32.totalorder %s28, 0
      %s31 = sadd.s32 %s30, 1
      %s32 = scalar_select %p29, %s30, %s31
      %p35 = pneg %p29
      %p36 = scmp.eq.s32.totalorder %s18, 4
      %p37 = por %p35, %p36
      %p38 = scmp.ne.s32.totalorder %s30, %s33
      %p39 = scmp.eq.s32.totalorder %s18, 0
      %p40 = por %p38, %p39
      %p41 = scmp.ne.s32.totalorder %s30, %s33
      %p42 = scmp.eq.s32.totalorder %s23, 4
      %p43 = por %p41, %p42
      %p44 = scmp.ne.s32.totalorder %s33, %s34
      %p45 = scmp.eq.s32.totalorder %s23, 0
      %p46 = por %p44, %p45
      %p47 = scmp.ne.s32.totalorder %s33, %s34
      %p48 = scmp.eq.s32.totalorder %s24, 4
      %p49 = por %p47, %p48
      %p51 = scmp.ne.s32.totalorder %s34, %s50
      %p52 = scmp.eq.s32.totalorder %s24, 0
      %p53 = por %p51, %p52
      %s54 = ssub.s32 %s18, %s25
      %p55 = scmp.eq.s32.totalorder %s54, 0
      %s57 = sadd.s32 %s56, 1
      %s58 = scalar_select %p55, %s56, %s57
      %p61 = pneg %p55
      %p62 = scmp.eq.s32.totalorder %s18, 4
      %p63 = por %p61, %p62
      %p64 = scmp.ne.s32.totalorder %s56, %s59
      %p65 = scmp.eq.s32.totalorder %s18, 0
      %p66 = por %p64, %p65
      %p67 = scmp.ne.s32.totalorder %s56, %s59
      %p68 = scmp.eq.s32.totalorder %s23, 4
      %p69 = por %p67, %p68
      %p70 = scmp.ne.s32.totalorder %s59, %s60
      %p71 = scmp.eq.s32.totalorder %s23, 0
      %p72 = por %p70, %p71
      %p73 = scmp.ne.s32.totalorder %s59, %s60
      %p74 = scmp.eq.s32.totalorder %s24, 4
      %p75 = por %p73, %p74
      %p77 = scmp.ne.s32.totalorder %s60, %s76
      %p78 = scmp.eq.s32.totalorder %s24, 0
      %p79 = por %p77, %p78
      %s80 = ssub.s32 %s18, %s25
      %p81 = scmp.eq.s32.totalorder %s80, 0
      %s83 = sadd.s32 %s82, 1
      %s84 = scalar_select %p81, %s82, %s83
      %p87 = pneg %p81
      %p88 = scmp.eq.s32.totalorder %s18, 4
      %p89 = por %p87, %p88
      %p90 = scmp.ne.s32.totalorder %s82, %s85
      %p91 = scmp.eq.s32.totalorder %s18, 0
      %p92 = por %p90, %p91
      %p93 = scmp.ne.s32.totalorder %s82, %s85
      %p94 = scmp.eq.s32.totalorder %s23, 4
      %p95 = por %p93, %p94
      %p96 = scmp.ne.s32.totalorder %s85, %s86
      %p97 = scmp.eq.s32.totalorder %s23, 0
      %p98 = por %p96, %p97
      %p99 = scmp.ne.s32.totalorder %s85, %s86
      %p100 = scmp.eq.s32.totalorder %s24, 4
      %p101 = por %p99, %p100
      %p103 = scmp.ne.s32.totalorder %s86, %s102
      %p104 = scmp.eq.s32.totalorder %s24, 0
      %p105 = por %p103, %p104
      %s106 = ssub.s32 %s18, %s25
      %p107 = scmp.eq.s32.totalorder %s106, 0
      %s109 = sadd.s32 %s108, 1
      %s110 = scalar_select %p107, %s108, %s109
      %p113 = pneg %p107
      %p114 = scmp.eq.s32.totalorder %s18, 4
      %p115 = por %p113, %p114
      %p116 = scmp.ne.s32.totalorder %s108, %s111
      %p117 = scmp.eq.s32.totalorder %s18, 0
      %p118 = por %p116, %p117
      %p119 = scmp.ne.s32.totalorder %s108, %s111
      %p120 = scmp.eq.s32.totalorder %s23, 4
      %p121 = por %p119, %p120
      %p122 = scmp.ne.s32.totalorder %s111, %s112
      %p123 = scmp.eq.s32.totalorder %s23, 0
      %p124 = por %p122, %p123
      %p125 = scmp.ne.s32.totalorder %s111, %s112
      %p126 = scmp.eq.s32.totalorder %s24, 4
      %p127 = por %p125, %p126
      %p129 = scmp.ne.s32.totalorder %s112, %s128
      %p130 = scmp.eq.s32.totalorder %s24, 0
      %p131 = por %p129, %p130
      %p132 = scmp.le.s32.totalorder 1, %s18
      %p133 = scmp.lt.s32.totalorder %s18, 6
      %p134 = pnand %p132, %p133
      %p135 = pneg %p134
      // Predicated region
      $region9: #{_run.1} parent=5 // pred_check
        _
      $region10: #{_run.1} parent=5 // pred_check_branch
        %137 = sbr.rel (%p134) target = $region12
      $region11: #{_run.1} parent=5 // pred_region
        %s138 = ssub.s32 %s18, 1
      $region12: #{_run.1} parent=5 // pred_fallthru
        _
      %p139 = scmp.lt.s32.totalorder %s18, 5
      // Predicated region
      $region13: #{_run.1} parent=5 // pred_check
        %p140 = pneg %p139
      $region14: #{_run.1} parent=5 // pred_check_branch
        %142 = sbr.rel (%p140) target = $region16
      $region15: #{_run.1} parent=5 // pred_region
        // Predicated region
        $region17: #{_run.1} parent=15 // pred_check
          %p143 = pneg %p40
        $region18: #{_run.1} parent=15 // pred_check_branch
          %145 = sbr.rel (%p143) target = $region20
        $region19: #{_run.1} parent=15 // pred_region
          %s146 = sld [smem:[#allocation3 + %s18]]
          %p147 = scmp.lt.s32.totalorder %s146, 4
          %s148 = scalar_select %p147, %s146, 4
          %s149 = smul.addr %s148, 8
          %s150 = scalar_lea.vmem %s1, %s149
          %s151 = sld [smem:[#allocation3 + %s18]]
        $region20: #{_run.1} parent=15 // pred_fallthru
          _
        // Predicated region
        $region21: #{_run.1} parent=15 // pred_check
          %p152 = pneg %p66
        $region22: #{_run.1} parent=15 // pred_check_branch
          %154 = sbr.rel (%p152) target = $region24
        $region23: #{_run.1} parent=15 // pred_region
          %s155 = sand.u32 %s56, 1
          %s156 = sand.u32 %s56, 1
          %s157 = smul.addr %s156, 48
          %s158 = scalar_lea.vmem [#allocation4], %s157
          %s159 = smul.u32 3, %s18
          %s160 = smul.addr %s159, 4
          %s161 = scalar_lea.vmem %s2, %s160
          // Predicated region
          $region25: #{_run.1} parent=23 // pred_check
            _
          $region26: #{_run.1} parent=23 // pred_check_branch
            %163 = sbr.rel (0) target = $region28
          $region27: #{_run.1} parent=23 // pred_region
            // Predicated region
            $region29: #{_run.1} parent=27 // pred_check
              _
            $region30: #{_run.1} parent=27 // pred_check_branch
              %165 = sbr.rel (0) target = $region32
            $region31: #{_run.1} parent=27 // pred_region
              %s166 = scalar_lea.vmem %s161, 8
              %s167 = scalar_lea.vmem %s158, 8 [#allocation4]
              loop: start=0, step=1, limit=1
              $region33: #{_run.1} parent=31 // loop_pre_header
                _
              $region34: #{_run.1} parent=31 // loop_header
                %s169 = sphi 0, %s173
                %p170 = scmp.ge.s32.totalorder %s169, 1
                %s174 = sphi %s161, %s161
                %s175 = sphi %s158, %s158
              $region35: #{_run.1} parent=31 // loop_header_branch
                %172 = sbr.rel (%p170) target = $region39
              $region36: #{_run.1} parent=31 // loop_body
                %v176 = vld [vmem:[%s174] sm:$0xff]
                %177 = vst [vmem:[%s175] sm:$0xff] %v176
                %v178 = vld [vmem:[%s174 + $0x3c] sm:$0xff]
                %179 = vst [vmem:[%s175 + $0xc] sm:$0xff] %v178
                %v180 = vld [vmem:[%s174 + $0x78] sm:$0xff]
                %181 = vst [vmem:[%s175 + $0x18] sm:$0xff] %v180
                %v182 = vld [vmem:[%s174 + $0xb4] sm:$0xff]
                %183 = vst [vmem:[%s175 + $0x24] sm:$0xff] %v182
              $region37: #{_run.1} parent=31 // loop_footer
                %s173 = sadd.s32 1, %s169
              $region38: #{_run.1} parent=31 // loop_footer_branch
                %168 = sbr.rel target = $region34
              $region39: #{_run.1} parent=31 // loop_exit
                _
              %s185 = ssub.s32 16, 1
              loop: start=0, step=1, limit=1
              $region40: #{_run.1} parent=31 // loop_pre_header
                _
              $region41: #{_run.1} parent=31 // loop_header
                %s187 = sphi 0, %s191
                %p188 = scmp.ge.s32.totalorder %s187, 1
                %s192 = sphi %s166, %s166
                %s193 = sphi %s167, %s167
              $region42: #{_run.1} parent=31 // loop_header_branch
                %190 = sbr.rel (%p188) target = $region46
              $region43: #{_run.1} parent=31 // loop_body
                %v194 = vld [vmem:[%s192] sm:%s185]
                %195 = vst [vmem:[%s193] sm:%s185] %v194
                %v196 = vld [vmem:[%s192 + $0x3c] sm:%s185]
                %197 = vst [vmem:[%s193 + $0xc] sm:%s185] %v196
                %v198 = vld [vmem:[%s192 + $0x78] sm:%s185]
                %199 = vst [vmem:[%s193 + $0x18] sm:%s185] %v198
                %v200 = vld [vmem:[%s192 + $0xb4] sm:%s185]
                %201 = vst [vmem:[%s193 + $0x24] sm:%s185] %v200
              $region44: #{_run.1} parent=31 // loop_footer
                %s191 = sadd.s32 1, %s187
              $region45: #{_run.1} parent=31 // loop_footer_branch
                %186 = sbr.rel target = $region41
              $region46: #{_run.1} parent=31 // loop_exit
                _
            $region32: #{_run.1} parent=27 // pred_fallthru
              _
          $region28: #{_run.1} parent=23 // pred_fallthru
            _
          %202 = vnop
        $region24: #{_run.1} parent=15 // pred_fallthru
          _
        // Predicated region
        $region47: #{_run.1} parent=15 // pred_check
          %p203 = pneg %p92
        $region48: #{_run.1} parent=15 // pred_check_branch
          %205 = sbr.rel (%p203) target = $region50
        $region49: #{_run.1} parent=15 // pred_region
          %s206 = smul.u32 3, %s18
          %p207 = scmp.lt.s32.totalorder %s206, 14
          %s208 = scalar_select %p207, %s206, 14
          %s209 = scalar_lea.vmem %s3, %s208
          %s210 = smul.u32 3, %s18
        $region50: #{_run.1} parent=15 // pred_fallthru
          _
      $region16: #{_run.1} parent=5 // pred_fallthru
        _
      %p211 = scmp.le.s32.totalorder 1, %s18
      %p212 = scmp.lt.s32.totalorder %s18, 6
      %p213 = pnand %p211, %p212
      %p214 = pneg %p213
      // Predicated region
      $region51: #{_run.1} parent=5 // pred_check
        _
      $region52: #{_run.1} parent=5 // pred_check_branch
        %216 = sbr.rel (%p213) target = $region54
      $region53: #{_run.1} parent=5 // pred_region
        %s217 = ssub.s32 %s18, 1
        %s218 = sand.u32 %s59, 1
        %s219 = sand.u32 %s59, 1
        %s220 = smul.addr %s219, 48
        %s221 = scalar_lea.vmem [#allocation4], %s220
        // Predicated region
        $region55: #{_run.1} parent=53 // pred_check
          %p222 = pneg %p72
        $region56: #{_run.1} parent=53 // pred_check_branch
          %224 = sbr.rel (%p222) target = $region58
        $region57: #{_run.1} parent=53 // pred_region
          _
        $region58: #{_run.1} parent=53 // pred_fallthru
          _
        %s225 = sld [smem:[#allocation3 + %s23]]
        %p226 = scmp.lt.s32.totalorder %s225, 4
        %s227 = scalar_select %p226, %s225, 4
        %s228 = smul.addr %s227, 8
        %s229 = scalar_lea.vmem %s1, %s228
        %p230 = pneg %p46
        %p231 = pneg %p43
        %s232 = sand.u32 %s59, 1
        %s233 = sand.u32 %s59, 1
        %s234 = smul.addr %s233, 48
        %s235 = scalar_lea.vmem [#allocation4], %s234
        %p236 = pneg %p72
        %p237 = pneg %p69
        %s238 = smul.u32 3, %s23
        %p239 = scmp.lt.s32.totalorder %s238, 14
        %s240 = scalar_select %p239, %s238, 14
        %s241 = scalar_lea.vmem %s3, %s240
        %p242 = pneg %p98
        %p243 = pneg %p95
        %p244 = pneg %p124
        %p245 = pneg %p121
        %s246 = smul.u32 3, %s23
        %p247 = scmp.lt.s32.totalorder %s246, 14
        %s248 = scalar_select %p247, %s246, 14
        %s249 = smul.addr %s248, 8
        %s250 = scalar_lea.vmem %s4, %s249
        %s251 = sld [smem:[#allocation3 + %s23]]
        %p252 = scmp.lt.s32.totalorder %s251, 4
        %s253 = scalar_select %p252, %s251, 4
        %s254 = smul.addr %s253, 8
        %s255 = scalar_lea.vmem %s1, %s254
        %s256 = sld [smem:[#allocation3 + %s23]]
        %s257 = smul.u32 3, %s23
        %s258 = smul.u32 3, %s23
        %p259 = scmp.lt.s32.totalorder %s258, 14
        %s260 = scalar_select %p259, %s258, 14
        %s261 = scalar_lea.vmem %s3, %s260
        %s262 = smul.u32 3, %s23
        %s263 = smul.u32 3, %s23
        %p264 = scmp.lt.s32.totalorder %s263, 14
        %s265 = scalar_select %p264, %s263, 14
        %s266 = smul.addr %s265, 8
        %s267 = scalar_lea.vmem %s4, %s266
        %s268 = smul.u32 3, %s23
        %v270 = vld [vmem:[%s255] sm:$0xff]
        %v271 = vpack.c.bf16 %v270, %v270
        %v272 = vld [vmem:[%s221] sm:$0xff]
        %v273 = vld [vmem:[%s221 + $0x8] sm:$0xf]
        %v274 = vld [vmem:[%s221 + $0xc] sm:$0xff]
        %v275 = vld [vmem:[%s221 + $0x14] sm:$0xf]
        %v276 = vld [vmem:[%s221 + $0x18] sm:$0xff]
        %v277 = vld [vmem:[%s221 + $0x20] sm:$0xf]
        %v278 = vld [vmem:[%s221 + $0x24] sm:$0xff]
        %v279 = vld [vmem:[%s221 + $0x2c] sm:$0xf]
        %v280 = vld [vmem:[%s261] sm:$0x7]
        %v282 = vperm.slane %v280, 0
        %v283 = vperm.slane %v280, 1
        %v284 = vperm.slane %v280, 2
        %v296 = vunpack.c.l.b16 %v272
        %v297 = vunpack.c.h.b16 %v272
        %v298 = vunpack.c.l.b16 %v273
        %v299 = vunpack.c.l.b16 %v274
        %v300 = vunpack.c.h.b16 %v274
        %v301 = vunpack.c.l.b16 %v275
        %v302 = vunpack.c.l.b16 %v276
        %v303 = vunpack.c.h.b16 %v276
        %v304 = vunpack.c.l.b16 %v277
        %v305 = vunpack.c.l.b16 %v278
        %v306 = vunpack.c.h.b16 %v278
        %v307 = vunpack.c.l.b16 %v279
        %v308 = vpack.c.b16 %v299, %v296
        %v309 = vpack.c.b16 %v300, %v297
        %v310 = vpack.c.b16 %v301, %v298
        %v311 = vpack.c.b16 %v305, %v302
        %v312 = vpack.c.b16 %v306, %v303
        %v313 = vpack.c.b16 %v307, %v304
        %vm320 = vcmask 261120
        %v322 = vsel %vm320, %v271, 0
        %324 = vmatpush.bf16.msra.mxu0 0
        %325 = vmatpush.bf16.msra.mxu0 0
        %326 = vmatpush.bf16.msra.mxu0 0
        %327 = vmatpush.bf16.msra.mxu0 0
        %328 = vmatpush.bf16.msra.mxu0 0
        %329 = vmatpush.bf16.msra.mxu0 0
        %330 = vmatpush.bf16.msra.mxu0 %v311
        %331 = vmatpush.bf16.msra.mxu0 %v308
        %332 = vmatmul.bf16.gmra.mxu0 %v322
        %v333 = vpop.f32.mrf.mxu0
        %v334 = vadd.f32 %v282, %v333
        %v335 = vpop.f32.mrf.mxu0
        %336 = vdwg.mxu0
        %337 = vmatpush.bf16.msra.mxu0 0
        %338 = vmatpush.bf16.msra.mxu0 0
        %339 = vmatpush.bf16.msra.mxu0 0
        %340 = vmatpush.bf16.msra.mxu0 0
        %341 = vmatpush.bf16.msra.mxu0 0
        %342 = vmatpush.bf16.msra.mxu0 0
        %343 = vmatpush.bf16.msra.mxu0 %v312
        %344 = vmatpush.bf16.msra.mxu0 %v309
        %345 = vmatmul.bf16.gmra.mxu0 %v322
        %v346 = vpop.f32.mrf.mxu0
        %v347 = vadd.f32 %v283, %v346
        %v348 = vpop.f32.mrf.mxu0
        %349 = vdwg.mxu0
        %350 = vmatpush.bf16.msra.mxu0 0
        %351 = vmatpush.bf16.msra.mxu0 0
        %352 = vmatpush.bf16.msra.mxu0 0
        %353 = vmatpush.bf16.msra.mxu0 0
        %354 = vmatpush.bf16.msra.mxu0 0
        %355 = vmatpush.bf16.msra.mxu0 0
        %356 = vmatpush.bf16.msra.mxu0 %v313
        %357 = vmatpush.bf16.msra.mxu0 %v310
        %358 = vmatmul.bf16.gmra.mxu0 %v322
        %v359 = vpop.f32.mrf.mxu0
        %v360 = vadd.f32 %v284, %v359
        %v361 = vpop.f32.mrf.mxu0
        %362 = vdwg.mxu0
        %363 = vst [vmem:[%s267] sm:$0xff] %v334
        %364 = vst [vmem:[%s267 + $0x8] sm:$0xff] %v347
        %365 = vst [vmem:[%s267 + $0x10] sm:$0xff] %v360
        %s366 = smul.u32 3, %s23
        %p367 = scmp.lt.s32.totalorder %s366, 14
        %s368 = scalar_select %p367, %s366, 14
        %s369 = smul.addr %s368, 8
        %s370 = scalar_lea.vmem %s4, %s369
        // Predicated region
        $region59: #{_run.1} parent=53 // pred_check
          %p371 = pneg %p121
        $region60: #{_run.1} parent=53 // pred_check_branch
          %373 = sbr.rel (%p371) target = $region62
        $region61: #{_run.1} parent=53 // pred_region
          %s374 = smul.u32 3, %s23
        $region62: #{_run.1} parent=53 // pred_fallthru
          _
      $region54: #{_run.1} parent=5 // pred_fallthru
        _
      %p375 = scmp.le.s32.totalorder 2, %s18
      // Predicated region
      $region63: #{_run.1} parent=5 // pred_check
        %p376 = pneg %p375
      $region64: #{_run.1} parent=5 // pred_check_branch
        %378 = sbr.rel (%p376) target = $region66
      $region65: #{_run.1} parent=5 // pred_region
        %s379 = ssub.s32 %s18, 2
        // Predicated region
        $region67: #{_run.1} parent=65 // pred_check
          %p380 = pneg %p127
        $region68: #{_run.1} parent=65 // pred_check_branch
          %382 = sbr.rel (%p380) target = $region70
        $region69: #{_run.1} parent=65 // pred_region
          %s383 = smul.u32 3, %s24
          %p384 = scmp.lt.s32.totalorder %s383, 14
          %s385 = scalar_select %p384, %s383, 14
          %s386 = smul.addr %s385, 8
          %s387 = scalar_lea.vmem %s4, %s386
        $region70: #{_run.1} parent=65 // pred_fallthru
          _
      $region66: #{_run.1} parent=5 // pred_fallthru
        _
    $region6: #{_run.1} parent=1 // loop_footer
      %s22 = sadd.s32 1, %s18
    $region7: #{_run.1} parent=1 // loop_footer_branch
      %17 = sbr.rel target = $region3
    $region8: #{_run.1} parent=1 // loop_exit
      _

</llo_original>
